<compile_context>
chip_gen: v5e
topology: v5e:2x2
jax: 0.10.0
libtpu: 0.0.40
codegen_flags: <defaults>
</compile_context>

<pallas_src>
import math

import jax
import jax.numpy as jnp
from jax.experimental import pallas as pl
from jax.experimental.pallas import tpu as pltpu


def _layer_scale_kernel(x_ref, g_ref, o_ref):
    # x_ref: (TR, L) tile of flattened rows.
    # g_ref: (S, L) gamma block, S == 1 or S == dtype sublane count (TR % S == 0).
    x = x_ref[...]
    g = g_ref[...]
    tr, lanes = x.shape
    s = g.shape[0]
    if s == 1 or s == tr:
        y = x * g
    else:
        # Free reshape (splits the leading dim only; (S, L) stays (8/16/32, 128k)
        # aligned), avoids a per-step sublane broadcast of a 1-row operand.
        y = (x.reshape(tr // s, s, lanes) * g[None]).reshape(tr, lanes)
    o_ref[...] = y.astype(o_ref.dtype)


def _cdiv(a: int, b: int) -> int:
    return -(-a // b)


def _round_up(x: int, m: int) -> int:
    return _cdiv(x, m) * m


def _vmem_capacity_bytes() -> int:
    """Physical VMEM per TensorCore; conservative fallback if the query fails."""
    try:
        info = pltpu.get_tpu_info()
        cap = getattr(info, "vmem_capacity_bytes", None)
        if cap:
            return int(cap)
    except Exception:
        pass
    return 64 << 20  # v7x per-TC VMEM (the smallest of current generations)


def _pick_tile_rows(n_rows: int, row_bytes: int, sublane: int, target_tile_bytes: int) -> int:
    """Largest sublane-multiple row tile <= target bytes (no divisibility requirement)."""
    desired = max(sublane, target_tile_bytes // max(row_bytes, 1))
    desired -= desired % sublane
    desired = max(desired, sublane)

    if desired >= n_rows:
        # Whole array would fit in one tile.  Split in two (rounded up to the
        # sublane multiple) so both v7x TensorCores get work on the row axis.
        if n_rows >= 2 * sublane:
            return _round_up(_cdiv(n_rows, 2), sublane)
        return n_rows  # tiny input: one full-extent tile (always a legal block)
    return desired


def _evenize_grid(n_rows: int, tile_rows: int, sublane: int) -> int:
    """Nudge tile_rows down (never below ~half) so the grid-step count is even."""
    steps = _cdiv(n_rows, tile_rows)
    if steps <= 1 or steps % 2 == 0 or tile_rows <= sublane or tile_rows % sublane != 0:
        return tile_rows
    lo = max(sublane, (tile_rows // 2 // sublane) * sublane)
    t = tile_rows - sublane
    while t >= lo:
        if _cdiv(n_rows, t) % 2 == 0:
            return t
        t -= sublane
    return tile_rows


def layer_scale(
    x: jax.Array,
    gamma: jax.Array,
    *,
    target_tile_bytes: int = 8 * 1024 * 1024,  # 4-8 MiB amortizes grid-step overhead
    donate_x: bool = False,                    # alias x buffer into the output
) -> jax.Array:
    """Applies LayerScale: out = x * gamma (gamma broadcast over the trailing dim)."""
    orig_shape = x.shape
    dim = orig_shape[-1]
    assert gamma.shape == (dim,), f"gamma must be ({dim},), got {gamma.shape}"

    dtype = x.dtype
    itemsize = jnp.dtype(dtype).itemsize
    sublane = max(8, 32 // itemsize)  # dtype-aware sublane packing (8/16/32)
    total = math.prod(orig_shape)

    # ---- Lane-dense layout: last (lane) dim is always a multiple of 128. ----
    if dim % 128 == 0:
        lane_dim = dim
        pad_elems = 0
        g_row = gamma.astype(dtype)
    else:
        lane_dim = math.lcm(dim, 128)
        pad_elems = (-total) % lane_dim          # pad the flat view if needed (rare)
        g_row = jnp.tile(gamma.astype(dtype), lane_dim // dim)

    x_flat = x.reshape(-1)
    if pad_elems:
        x_flat = jnp.pad(x_flat, (0, pad_elems))
    x2d = x_flat.reshape(-1, lane_dim)
    n_rows = x2d.shape[0]
    row_bytes = lane_dim * itemsize

    # ---- Generation-aware tile / VMEM budgeting. ----
    vmem_cap = _vmem_capacity_bytes()
    vmem_budget = (vmem_cap * 3) // 4            # keep ~25% headroom
    gamma_bytes = sublane * lane_dim * itemsize
    margin = 2 << 20
    max_tile_bytes = max(512 * 1024, (vmem_budget - gamma_bytes - margin) // 4)
    eff_target = min(target_tile_bytes, max_tile_bytes)

    tile_rows = _pick_tile_rows(n_rows, row_bytes, sublane, eff_target)
    tile_rows = _evenize_grid(n_rows, tile_rows, sublane)
    tile_rows = min(tile_rows, n_rows)
    grid_steps = _cdiv(n_rows, tile_rows)

    tile_bytes = tile_rows * row_bytes
    vmem_limit = 4 * tile_bytes + gamma_bytes + margin   # 2x in + 2x out + gamma
    vmem_limit = int(max(16 << 20, min(vmem_limit, vmem_budget)))

    # ---- Gamma pre-broadcast to a full sublane block (fetched once, resident). ----
    g_rows = sublane if tile_rows % sublane == 0 else 1
    g_block = jnp.tile(g_row.reshape(1, lane_dim), (g_rows, 1))

    cost = pl.CostEstimate(
        flops=n_rows * lane_dim,
        transcendentals=0,
        bytes_accessed=2 * n_rows * lane_dim * itemsize + g_rows * lane_dim * itemsize,
    )

    out2d = pl.pallas_call(
        _layer_scale_kernel,
        out_shape=jax.ShapeDtypeStruct((n_rows, lane_dim), dtype),
        grid_spec=pltpu.PrefetchScalarGridSpec(
            num_scalar_prefetch=0,
            grid=(grid_steps,),
            in_specs=[
                pl.BlockSpec((tile_rows, lane_dim), lambda i: (i, 0)),
                pl.BlockSpec((g_rows, lane_dim), lambda i: (0, 0)),
            ],
            out_specs=pl.BlockSpec((tile_rows, lane_dim), lambda i: (i, 0)),
        ),
        compiler_params=pltpu.CompilerParams(
            dimension_semantics=("parallel",),
            vmem_limit_bytes=vmem_limit,
        ),
        cost_estimate=cost,
        input_output_aliases=({0: 0} if donate_x else {}),
    )(x2d, g_block)

    out_flat = out2d.reshape(-1)
    if pad_elems:
        out_flat = out_flat[:total]
    return out_flat.reshape(orig_shape)


if __name__ == "__main__":
    key = jax.random.PRNGKey(0)
    init_values = 1e-05

    # 1) Small smoke-test shape implied by the module (batch=2, seq=8, hidden=32).
    B, N, D = 2, 8, 32
    x = jax.random.normal(key, (B, N, D), dtype=jnp.float32)
    gamma = jnp.full((D,), init_values, dtype=jnp.float32)  # init_values * ones(dim)
    out = jax.block_until_ready(layer_scale(x, gamma))
    assert out.shape == x.shape and out.dtype == x.dtype
    assert jnp.allclose(out, x * gamma, rtol=1e-6, atol=1e-6)

    # 2) Lane-dense ViT-ish shape (D multiple of 128).
    x2 = jax.random.normal(jax.random.PRNGKey(1), (4, 256, 384), dtype=jnp.float32)
    g2 = jnp.linspace(0.5, 1.5, 384, dtype=jnp.float32)
    out2 = jax.block_until_ready(layer_scale(x2, g2))
    assert jnp.allclose(out2, x2 * g2, rtol=1e-6, atol=1e-6)

    # 3) Multi-tile grid with a partial (masked) last block.
    x3 = jax.random.normal(jax.random.PRNGKey(2), (1, 2056, 128), dtype=jnp.float32)
    g3 = jnp.linspace(-1.0, 1.0, 128, dtype=jnp.float32)
    out3 = jax.block_until_ready(layer_scale(x3, g3))
    assert jnp.allclose(out3, x3 * g3, rtol=1e-6, atol=1e-6)

    # 4) Non-128 channel dim where total elements are not a multiple of lcm(D,128):
    #    exercises the flat-pad lane-densify fallback.
    x4 = jax.random.normal(jax.random.PRNGKey(3), (3, 7, 96), dtype=jnp.float32)
    g4 = jnp.linspace(0.9, 1.1, 96, dtype=jnp.float32)
    out4 = jax.block_until_ready(layer_scale(x4, g4))
    assert jnp.allclose(out4, x4 * g4, rtol=1e-6, atol=1e-6)

    # 5) bf16 path (16-row sublane packing, gamma reshape-multiply branch).
    x5 = jax.random.normal(jax.random.PRNGKey(4), (2, 64, 256), dtype=jnp.bfloat16)
    g5 = jnp.linspace(0.5, 1.5, 256, dtype=jnp.float32)
    out5 = jax.block_until_ready(layer_scale(x5, g5))
    assert out5.dtype == jnp.bfloat16
    assert jnp.allclose(out5.astype(jnp.float32),
                        (x5 * g5.astype(jnp.bfloat16)).astype(jnp.float32),
                        rtol=2e-2, atol=2e-2)

    print("KERNEL_OK")
</pallas_src>

<mosaic_0001>
module attributes {stable_mosaic.version = 11 : i64} {
  func.func @_layer_scale_kernel(%arg0: i32, %arg1: memref<4x128xf32, #tpu.memory_space<vmem>>, %arg2: memref<1x128xf32, #tpu.memory_space<vmem>>, %arg3: memref<4x128xf32, #tpu.memory_space<vmem>>) attributes {dimension_semantics = [#tpu.dimension_semantics<parallel>], iteration_bounds = array<i64: 1>, scalar_prefetch = 0 : i64, scratch_operands = 0 : i64, tpu.core_type = #tpu.core_type<tc>, window_params = [{transform_indices = @transform_0, window_bounds = array<i64: 4, 128>}, {pipeline_mode = #tpu.pipeline_mode<synchronous>, transform_indices = @transform_1, window_bounds = array<i64: 1, 128>}, {transform_indices = @transform_2, window_bounds = array<i64: 4, 128>}]} {
    %c0 = arith.constant 0 : index
    %c0_0 = arith.constant 0 : index
    %0 = vector.load %arg1[%c0, %c0_0] : memref<4x128xf32, #tpu.memory_space<vmem>>, vector<4x128xf32>
    %c0_1 = arith.constant 0 : index
    %c0_2 = arith.constant 0 : index
    %1 = vector.load %arg2[%c0_1, %c0_2] : memref<1x128xf32, #tpu.memory_space<vmem>>, vector<1x128xf32>
    %2 = vector.broadcast %1 : vector<1x128xf32> to vector<4x128xf32>
    %3 = arith.mulf %0, %2 : vector<4x128xf32>
    %c0_3 = arith.constant 0 : index
    %c0_4 = arith.constant 0 : index
    %4 = vector.load %arg3[%c0_3, %c0_4] : memref<4x128xf32, #tpu.memory_space<vmem>>, vector<4x128xf32>
    tpu.vector_store %arg3[%c0_3, %c0_4], %3 {strides = array<i32>} : memref<4x128xf32, #tpu.memory_space<vmem>>, vector<4x128xf32>,
    return
  }
  func.func @transform_0(%arg0: i32) -> (i32, i32) {
    %c0_i32 = arith.constant 0 : i32
    %c0_i32_0 = arith.constant 0 : i32
    return %arg0, %c0_i32 : i32, i32
  }
  func.func @transform_1(%arg0: i32) -> (i32, i32) {
    %c0_i32 = arith.constant 0 : i32
    %c0_i32_0 = arith.constant 0 : i32
    %c0_i32_1 = arith.constant 0 : i32
    return %c0_i32, %c0_i32_0 : i32, i32
  }
  func.func @transform_2(%arg0: i32) -> (i32, i32) {
    %c0_i32 = arith.constant 0 : i32
    %c0_i32_0 = arith.constant 0 : i32
    return %arg0, %c0_i32 : i32, i32
  }
}

</mosaic_0001>

<llo_original>
// kernel: tpu_custom_call.1
$region0: #{tpu_custom_call.1}
  #allocation0 [shape = 'u32[]', space=smem, size = 0x4, offset = 0x4, fixed_abs, tag = 'smem constant byte address 0x4 - core index']
  #allocation1 [shape = 'u32[72,128]{1,0:T(1,128)}', space=vmem, size = 0x9000, scoped, tag = 'internal scratch']
  %s0 = inlined_call_operand.hbm [shape: f32[4,128], index: 0, kind: input, shape index: {}]
  %s1 = inlined_call_operand.hbm [shape: f32[1,128], index: 1, kind: input, shape index: {}]
  %s2 = inlined_call_operand.hbm [shape: f32[4,128], index: 2, kind: output, shape index: {}]
  %s3 = sld [smem:[#allocation0]]
  $region26: #{tpu_custom_call.1} parent=0
    _
  %s5 = ssub.s32 1, %s3
  %s6 = scalar_select 0, %s5, %s3
  $region1: #{tpu_custom_call.1} parent=0
    #allocation2 [shape = 'u8[2048]{0}', space=vmem, size = 0x800, scoped, tag = 'input window, operand 0, single buffered']
    #allocation3 [shape = 's32[1]{0}', space=sflag, size = 0x4, scoped, tag = 'scoped memory for tpu_custom_call.1']
    #allocation4 [shape = 's32[1]{0}', space=sflag, size = 0x4, scoped, tag = 'scoped memory for tpu_custom_call.1']
    #allocation5 [shape = 'u8[512]{0}', space=vmem, size = 0x400, scoped, tag = 'input window, operand 1, single buffered']
    #allocation6 [shape = 's32[1]{0}', space=sflag, size = 0x4, scoped, tag = 'scoped memory for tpu_custom_call.1']
    #allocation7 [shape = 'u8[2048]{0}', space=vmem, size = 0x800, scoped, tag = 'output window, operand 0, single buffered']
    %7 = vsyncpa [#allocation3], 0
    %8 = vsyncpa [#allocation6], 0
    %9 = vsyncpa [#allocation4], 0
    // Predicated region
    $region2: #{tpu_custom_call.1} parent=1 // pred_check
      _
    $region3: #{tpu_custom_call.1} parent=1 // pred_check_branch
      %11 = sbr.rel (0) target = $region5
    $region4: #{tpu_custom_call.1} parent=1 // pred_region
      %13 = vsyncadd [#allocation3], 0
      %s15 = sshll.u32 %s0, 4
      %s16 = int_to_ptr.hbm [resolvable:$true] %s15
      %s17 = sshll.u32 [#allocation2], 4
      %s18 = int_to_ptr.vmem [resolvable:$true] %s17
      %20 = dma.hbm_to_vmem [thread:$0]  %s16, 64, %s18, [#allocation3]
    $region5: #{tpu_custom_call.1} parent=1 // pred_fallthru
      _
    // Predicated region
    $region6: #{tpu_custom_call.1} parent=1 // pred_check
      _
    $region7: #{tpu_custom_call.1} parent=1 // pred_check_branch
      %22 = sbr.rel (0) target = $region9
    $region8: #{tpu_custom_call.1} parent=1 // pred_region
      %24 = vsyncadd [#allocation6], 0
      %s26 = sshll.u32 %s1, 4
      %s27 = int_to_ptr.hbm [resolvable:$true] %s26
      %s28 = sshll.u32 [#allocation5], 4
      %s29 = int_to_ptr.vmem [resolvable:$true] %s28
      %31 = dma.hbm_to_vmem [thread:$0]  %s27, 16, %s29, [#allocation6]
    $region9: #{tpu_custom_call.1} parent=1 // pred_fallthru
      _
    // Predicated region
    $region10: #{tpu_custom_call.1} parent=1 // pred_check
      _
    $region11: #{tpu_custom_call.1} parent=1 // pred_check_branch
      %33 = sbr.rel (0) target = $region13
    $region12: #{tpu_custom_call.1} parent=1 // pred_region
      %35 = dma.done [#allocation3], 64
    $region13: #{tpu_custom_call.1} parent=1 // pred_fallthru
      _
    // Predicated region
    $region14: #{tpu_custom_call.1} parent=1 // pred_check
      _
    $region15: #{tpu_custom_call.1} parent=1 // pred_check_branch
      %37 = sbr.rel (0) target = $region17
    $region16: #{tpu_custom_call.1} parent=1 // pred_region
      %39 = dma.done [#allocation6], 16
    $region17: #{tpu_custom_call.1} parent=1 // pred_fallthru
      _
    %v40 = vld [vmem:[#allocation2] sm:$0xf]
    %v41 = vld [vmem:[#allocation5] sm:$0x1]
    %v43 = vperm.slane %v41, 0
    %v45 = vmul.f32 %v40, %v43
    %46 = vst [vmem:[#allocation7] sm:$0xf] %v45
    // Predicated region
    $region18: #{tpu_custom_call.1} parent=1 // pred_check
      _
    $region19: #{tpu_custom_call.1} parent=1 // pred_check_branch
      %48 = sbr.rel (0) target = $region21
    $region20: #{tpu_custom_call.1} parent=1 // pred_region
      %50 = vsyncadd [#allocation4], 0
      %s52 = sshll.u32 [#allocation7], 4
      %s53 = int_to_ptr.vmem [resolvable:$true] %s52
      %s54 = sshll.u32 %s2, 4
      %s55 = int_to_ptr.hbm [resolvable:$true] %s54
      %57 = dma.vmem_to_hbm [thread:$0]  %s53, 64, %s55, [#allocation4]
    $region21: #{tpu_custom_call.1} parent=1 // pred_fallthru
      _
    // Predicated region
    $region22: #{tpu_custom_call.1} parent=1 // pred_check
      _
    $region23: #{tpu_custom_call.1} parent=1 // pred_check_branch
      %59 = sbr.rel (0) target = $region25
    $region24: #{tpu_custom_call.1} parent=1 // pred_region
      %61 = dma.done [#allocation4], 64
    $region25: #{tpu_custom_call.1} parent=1 // pred_fallthru
      _
    %62 = vsyncpa [#allocation3], 1
    %63 = vsyncpa [#allocation6], 1
    %64 = vsyncpa [#allocation4], 1

</llo_original>
